<compile_context>
chip_gen: v7x
topology: tpu7x:2x2x1
jax: 0.10.0
libtpu: 0.0.40
codegen_flags: <defaults>
</compile_context>

<pallas_src>
import jax
import jax.numpy as jnp
from jax.experimental import pallas as pl
from jax.experimental.pallas import tpu as pltpu


def _make_meta_encoder2_kernel(max_charge, row_chunk, num_chunks):
    """Builds the kernel for a fixed tile layout (rows per chunk / # chunks)."""

    def kernel(charge_ref, w_ref, b_ref, out_ref):
        # charge_ref: (TB, 1) int32 | w_ref: (C, H) | b_ref: (1, H) | out_ref: (TB, H)
        h = out_ref.shape[1]
        bias = b_ref[...].astype(jnp.float32)                 # (1, H)
        w = w_ref[...].astype(jnp.float32)                     # (C, H), C tiny
        w_rows = [w[c:c + 1, :] for c in range(max_charge)]    # each (1, H), hoisted

        def compute_chunk(r0, rows):
            ch = charge_ref[pl.ds(r0, rows), :]                # (rows, 1) int32
            acc = jnp.broadcast_to(bias, (rows, h))            # f32 accumulate
            for c in range(max_charge):                        # VPU select-adds
                sel = (ch == c).astype(jnp.float32)            # (rows, 1)
                acc = acc + sel * w_rows[c]                     # (rows,1) * (1,H)
            # Dropout is identity at inference.
            out_ref[pl.ds(r0, rows), :] = acc.astype(out_ref.dtype)

        if num_chunks == 1:
            compute_chunk(0, row_chunk)
        else:
            def body(r, carry):
                r0 = pl.multiple_of(r * row_chunk, row_chunk)
                compute_chunk(r0, row_chunk)
                return carry

            jax.lax.fori_loop(0, num_chunks, body, 0, unroll=True)

    return kernel


def meta_encoder2_forward(charge, weight, bias, *, max_charge,
                          target_tile_bytes=1 << 20, row_chunk=256):
    """MetaEncoder2.forward (charge-only, eval): one_hot(charge) @ weight + bias.

    Args:
      charge: (B,) int array of charge indices.
      weight: (max_charge, H) array (== torch nn.Linear.weight.T).
      bias:   (H,) array.
    Returns:
      (B, H) array.

    Note: for tiny B*H, prefer `jnp.take(weight, charge, axis=0) + bias` so XLA
    fuses the lookup into the consumer; a standalone kernel launch is pure
    overhead at that size.
    """
    B = charge.shape[0]
    C, H = weight.shape
    assert C == max_charge, "weight rows must equal max_charge"
    assert bias.shape == (H,)

    charge2d = charge.reshape(B, 1).astype(jnp.int32)
    bias2d = bias.reshape(1, H)

    db = jnp.dtype(weight.dtype).itemsize
    sub = 16 if db == 2 else 8                       # bf16 packs 16 rows per sublane pair
    row_chunk = max(sub, (row_chunk // sub) * sub)

    # --- batch tile: ~target_tile_bytes of output per grid step -------------
    tb = max(sub, ((target_tile_bytes // (H * db)) // sub) * sub)
    if tb >= B:
        if B >= 2 * row_chunk:
            # Keep >= 2 grid steps so ("parallel",) can shard the writeback
            # across v7x's two TensorCores.
            half = (B + 1) // 2
            tb = ((half + row_chunk - 1) // row_chunk) * row_chunk
        else:
            tb = B                                   # small batch: one full-extent tile
    elif tb >= row_chunk:
        tb = (tb // row_chunk) * row_chunk

    # --- VMEM budget: double-buffered out tile + lane-padded (tb,1) int32
    #     charge tile (1 -> 128 lanes) + single-buffered weight/bias. Stay well
    #     under the 32 MiB scoped default (64 MiB physical on v7x). ----------
    def vmem_bytes(rows):
        return 2 * rows * H * db + 2 * rows * 128 * 4 + C * H * db + 128 * db

    while tb > row_chunk and vmem_bytes(tb) > 24 * 1024 * 1024:
        tb = max(row_chunk, ((tb // 2) // row_chunk) * row_chunk)

    if tb % row_chunk == 0:
        rc, num_chunks = row_chunk, tb // row_chunk
    else:
        rc, num_chunks = tb, 1

    grid = (pl.cdiv(B, tb),)

    cost = pl.CostEstimate(
        flops=2 * B * C * H,
        transcendentals=0,
        bytes_accessed=B * 4 + (C * H + H) * db + B * H * db,
    )

    return pl.pallas_call(
        _make_meta_encoder2_kernel(C, rc, num_chunks),
        out_shape=jax.ShapeDtypeStruct((B, H), weight.dtype),
        grid_spec=pltpu.PrefetchScalarGridSpec(
            num_scalar_prefetch=0,
            grid=grid,
            in_specs=[
                pl.BlockSpec((tb, 1), lambda i: (i, 0)),        # charge tile (VMEM)
                pl.BlockSpec((C, H), lambda i: (0, 0),          # weight: resident,
                             pipeline_mode=pl.Buffered(buffer_count=1)),
                pl.BlockSpec((1, H), lambda i: (0, 0),          # bias: resident,
                             pipeline_mode=pl.Buffered(buffer_count=1)),
            ],
            out_specs=pl.BlockSpec((tb, H), lambda i: (i, 0)),  # lane-dense stores
        ),
        compiler_params=pltpu.CompilerParams(
            dimension_semantics=("parallel",),
        ),
        cost_estimate=cost,
    )(charge2d, weight, bias2d)


if __name__ == "__main__":
    MAX_CHARGE, H = 6, 128      # H multiple of 128 -> unmasked lane-dense stores

    key = jax.random.PRNGKey(0)
    kw, kb, kc = jax.random.split(key, 3)
    weight = jax.random.normal(kw, (MAX_CHARGE, H), dtype=jnp.float32) * 0.1
    bias = jax.random.normal(kb, (H,), dtype=jnp.float32) * 0.1

    def reference(charge):
        onehot = jax.nn.one_hot(charge, MAX_CHARGE, dtype=jnp.float32)
        return onehot @ weight + bias

    # B=16: tiny single-tile path; B=1000: two parallel grid steps (v7x split);
    # B=4136: multi-tile grid + 256-row chunked stores + partial final block.
    for i, B in enumerate((16, 1000, 4136)):
        charge = jax.random.randint(jax.random.fold_in(kc, i), (B,), 0,
                                    MAX_CHARGE, dtype=jnp.int32)
        out = jax.block_until_ready(
            meta_encoder2_forward(charge, weight, bias, max_charge=MAX_CHARGE))
        ref = reference(charge)
        assert out.shape == (B, H)
        assert jnp.allclose(out, ref, atol=1e-5, rtol=1e-5), f"mismatch at B={B}"

    print("KERNEL_OK")
</pallas_src>

<mosaic_0001>
module attributes {stable_mosaic.version = 11 : i64} {
  func.func @kernel(%arg0: i32, %arg1: memref<16x1xi32, #tpu.memory_space<vmem>>, %arg2: memref<6x128xf32, #tpu.memory_space<vmem>>, %arg3: memref<1x128xf32, #tpu.memory_space<vmem>>, %arg4: memref<16x128xf32, #tpu.memory_space<vmem>>) attributes {dimension_semantics = [#tpu.dimension_semantics<parallel>], iteration_bounds = array<i64: 1>, scalar_prefetch = 0 : i64, scratch_operands = 0 : i64, tpu.core_type = #tpu.core_type<tc>, window_params = [{transform_indices = @transform_0, window_bounds = array<i64: 16, 1>}, {pipeline_mode = #tpu.pipeline_mode<synchronous>, transform_indices = @transform_1, window_bounds = array<i64: 6, 128>}, {pipeline_mode = #tpu.pipeline_mode<synchronous>, transform_indices = @transform_2, window_bounds = array<i64: 1, 128>}, {transform_indices = @transform_3, window_bounds = array<i64: 16, 128>}]} {
    %c0 = arith.constant 0 : index
    %c0_0 = arith.constant 0 : index
    %0 = vector.load %arg3[%c0, %c0_0] : memref<1x128xf32, #tpu.memory_space<vmem>>, vector<1x128xf32>
    %c0_1 = arith.constant 0 : index
    %c0_2 = arith.constant 0 : index
    %1 = vector.load %arg2[%c0_1, %c0_2] : memref<6x128xf32, #tpu.memory_space<vmem>>, vector<6x128xf32>
    %2 = vector.extract_strided_slice %1 {offsets = [0, 0], sizes = [1, 128], strides = [1, 1]} : vector<6x128xf32> to vector<1x128xf32>
    %3 = vector.extract_strided_slice %1 {offsets = [1, 0], sizes = [1, 128], strides = [1, 1]} : vector<6x128xf32> to vector<1x128xf32>
    %4 = vector.extract_strided_slice %1 {offsets = [2, 0], sizes = [1, 128], strides = [1, 1]} : vector<6x128xf32> to vector<1x128xf32>
    %5 = vector.extract_strided_slice %1 {offsets = [3, 0], sizes = [1, 128], strides = [1, 1]} : vector<6x128xf32> to vector<1x128xf32>
    %6 = vector.extract_strided_slice %1 {offsets = [4, 0], sizes = [1, 128], strides = [1, 1]} : vector<6x128xf32> to vector<1x128xf32>
    %7 = vector.extract_strided_slice %1 {offsets = [5, 0], sizes = [1, 128], strides = [1, 1]} : vector<6x128xf32> to vector<1x128xf32>
    %c0_3 = arith.constant 0 : index
    %c0_4 = arith.constant 0 : index
    %8 = vector.load %arg1[%c0_3, %c0_4] : memref<16x1xi32, #tpu.memory_space<vmem>>, vector<16x1xi32>
    %9 = vector.shape_cast %0 : vector<1x128xf32> to vector<1x128xf32>
    %10 = vector.broadcast %9 : vector<1x128xf32> to vector<16x128xf32>
    %c0_i32 = arith.constant 0 : i32
    %11 = vector.broadcast %c0_i32 : i32 to vector<16x1xi32>
    %12 = arith.cmpi eq, %8, %11 : vector<16x1xi32>
    %13 = arith.extui %12 : vector<16x1xi1> to vector<16x1xi32>
    %14 = arith.sitofp %13 : vector<16x1xi32> to vector<16x1xf32>
    %15 = vector.broadcast %14 : vector<16x1xf32> to vector<16x128xf32>
    %16 = vector.broadcast %2 : vector<1x128xf32> to vector<16x128xf32>
    %17 = arith.mulf %15, %16 : vector<16x128xf32>
    %18 = arith.addf %10, %17 : vector<16x128xf32>
    %c1_i32 = arith.constant 1 : i32
    %19 = vector.broadcast %c1_i32 : i32 to vector<16x1xi32>
    %20 = arith.cmpi eq, %8, %19 : vector<16x1xi32>
    %21 = arith.extui %20 : vector<16x1xi1> to vector<16x1xi32>
    %22 = arith.sitofp %21 : vector<16x1xi32> to vector<16x1xf32>
    %23 = vector.broadcast %22 : vector<16x1xf32> to vector<16x128xf32>
    %24 = vector.broadcast %3 : vector<1x128xf32> to vector<16x128xf32>
    %25 = arith.mulf %23, %24 : vector<16x128xf32>
    %26 = arith.addf %18, %25 : vector<16x128xf32>
    %c2_i32 = arith.constant 2 : i32
    %27 = vector.broadcast %c2_i32 : i32 to vector<16x1xi32>
    %28 = arith.cmpi eq, %8, %27 : vector<16x1xi32>
    %29 = arith.extui %28 : vector<16x1xi1> to vector<16x1xi32>
    %30 = arith.sitofp %29 : vector<16x1xi32> to vector<16x1xf32>
    %31 = vector.broadcast %30 : vector<16x1xf32> to vector<16x128xf32>
    %32 = vector.broadcast %4 : vector<1x128xf32> to vector<16x128xf32>
    %33 = arith.mulf %31, %32 : vector<16x128xf32>
    %34 = arith.addf %26, %33 : vector<16x128xf32>
    %c3_i32 = arith.constant 3 : i32
    %35 = vector.broadcast %c3_i32 : i32 to vector<16x1xi32>
    %36 = arith.cmpi eq, %8, %35 : vector<16x1xi32>
    %37 = arith.extui %36 : vector<16x1xi1> to vector<16x1xi32>
    %38 = arith.sitofp %37 : vector<16x1xi32> to vector<16x1xf32>
    %39 = vector.broadcast %38 : vector<16x1xf32> to vector<16x128xf32>
    %40 = vector.broadcast %5 : vector<1x128xf32> to vector<16x128xf32>
    %41 = arith.mulf %39, %40 : vector<16x128xf32>
    %42 = arith.addf %34, %41 : vector<16x128xf32>
    %c4_i32 = arith.constant 4 : i32
    %43 = vector.broadcast %c4_i32 : i32 to vector<16x1xi32>
    %44 = arith.cmpi eq, %8, %43 : vector<16x1xi32>
    %45 = arith.extui %44 : vector<16x1xi1> to vector<16x1xi32>
    %46 = arith.sitofp %45 : vector<16x1xi32> to vector<16x1xf32>
    %47 = vector.broadcast %46 : vector<16x1xf32> to vector<16x128xf32>
    %48 = vector.broadcast %6 : vector<1x128xf32> to vector<16x128xf32>
    %49 = arith.mulf %47, %48 : vector<16x128xf32>
    %50 = arith.addf %42, %49 : vector<16x128xf32>
    %c5_i32 = arith.constant 5 : i32
    %51 = vector.broadcast %c5_i32 : i32 to vector<16x1xi32>
    %52 = arith.cmpi eq, %8, %51 : vector<16x1xi32>
    %53 = arith.extui %52 : vector<16x1xi1> to vector<16x1xi32>
    %54 = arith.sitofp %53 : vector<16x1xi32> to vector<16x1xf32>
    %55 = vector.broadcast %54 : vector<16x1xf32> to vector<16x128xf32>
    %56 = vector.broadcast %7 : vector<1x128xf32> to vector<16x128xf32>
    %57 = arith.mulf %55, %56 : vector<16x128xf32>
    %58 = arith.addf %50, %57 : vector<16x128xf32>
    %c0_5 = arith.constant 0 : index
    %c0_6 = arith.constant 0 : index
    %59 = vector.load %arg4[%c0_5, %c0_6] : memref<16x128xf32, #tpu.memory_space<vmem>>, vector<16x128xf32>
    tpu.vector_store %arg4[%c0_5, %c0_6], %58 {strides = array<i32>} : memref<16x128xf32, #tpu.memory_space<vmem>>, vector<16x128xf32>,
    return
  }
  func.func @transform_0(%arg0: i32) -> (i32, i32) {
    %c0_i32 = arith.constant 0 : i32
    %c0_i32_0 = arith.constant 0 : i32
    return %arg0, %c0_i32 : i32, i32
  }
  func.func @transform_1(%arg0: i32) -> (i32, i32) {
    %c0_i32 = arith.constant 0 : i32
    %c0_i32_0 = arith.constant 0 : i32
    %c0_i32_1 = arith.constant 0 : i32
    return %c0_i32, %c0_i32_0 : i32, i32
  }
  func.func @transform_2(%arg0: i32) -> (i32, i32) {
    %c0_i32 = arith.constant 0 : i32
    %c0_i32_0 = arith.constant 0 : i32
    %c0_i32_1 = arith.constant 0 : i32
    return %c0_i32, %c0_i32_0 : i32, i32
  }
  func.func @transform_3(%arg0: i32) -> (i32, i32) {
    %c0_i32 = arith.constant 0 : i32
    %c0_i32_0 = arith.constant 0 : i32
    return %arg0, %c0_i32 : i32, i32
  }
}

</mosaic_0001>

<llo_original>
// kernel: tpu_custom_call.1
$region0: #{tpu_custom_call.1}
  #allocation0 [shape = 'u32[]', space=smem, size = 0x4, offset = 0x4, fixed_abs, tag = 'smem constant byte address 0x4 - core index']
  #allocation1 [shape = 'u32[144,128]{1,0:T(1,128)}', space=vmem, size = 0x12000, scoped, tag = 'internal scratch']
  %s0 = inlined_call_operand.vmem [shape: s32[16,1], index: 0, kind: input, shape index: {}]
  %s1 = inlined_call_operand.vmem [shape: f32[6,128], index: 1, kind: input, shape index: {}]
  %s2 = inlined_call_operand.vmem [shape: f32[1,128], index: 2, kind: input, shape index: {}]
  %s3 = inlined_call_operand.hbm [shape: f32[16,128], index: 3, kind: output, shape index: {}]
  %s4 = sld [smem:[#allocation0]]
  $region22: #{tpu_custom_call.1} parent=0
    _
  %s6 = ssub.s32 1, %s4
  %s7 = scalar_select 0, %s6, %s4
  $region1: #{tpu_custom_call.1} parent=0
    #allocation2 [shape = 'u8[8192]{0}', space=vmem, size = 0x2000, scoped, tag = 'output window, operand 0, single buffered']
    #allocation3 [shape = 's32[1]{0}', space=sflag, size = 0x4, scoped, tag = 'scoped memory for tpu_custom_call.1']
    %8 = vsyncpa [#allocation3], 0
    // Predicated region
    $region2: #{tpu_custom_call.1} parent=1 // pred_check
      _
    $region3: #{tpu_custom_call.1} parent=1 // pred_check_branch
      %10 = sbr.rel (0) target = $region5
    $region4: #{tpu_custom_call.1} parent=1 // pred_region
      _
    $region5: #{tpu_custom_call.1} parent=1 // pred_fallthru
      _
    // Predicated region
    $region6: #{tpu_custom_call.1} parent=1 // pred_check
      _
    $region7: #{tpu_custom_call.1} parent=1 // pred_check_branch
      %12 = sbr.rel (0) target = $region9
    $region8: #{tpu_custom_call.1} parent=1 // pred_region
      _
    $region9: #{tpu_custom_call.1} parent=1 // pred_fallthru
      _
    // Predicated region
    $region10: #{tpu_custom_call.1} parent=1 // pred_check
      _
    $region11: #{tpu_custom_call.1} parent=1 // pred_check_branch
      %14 = sbr.rel (0) target = $region13
    $region12: #{tpu_custom_call.1} parent=1 // pred_region
      _
    $region13: #{tpu_custom_call.1} parent=1 // pred_fallthru
      _
    %v15 = vld [vmem:[%s2] sm:$0x1]
    %v16 = vld [vmem:[%s1] sm:$0x3f]
    %v17 = vld [vmem:[%s0] sm:$0xff]
    %v18 = vld [vmem:[%s0 + $0x8] sm:$0xff]
    %v20 = vlaneseq
    %v21 = vshrl.u32 %v20, 7
    %v22 = vsub.s32 0, %v21
    %v23 = vrot.slane %v15, %v22
    %vm25 = vcmp.eq.s32.totalorder %v17, 0
    %vm26 = vcmp.eq.s32.totalorder %v18, 0
    %v27 = vsel %vm25, 1, 0
    %v28 = vsel %vm26, 1, 0
    %v29 = vcvt.s32.f32 %v27
    %v30 = vcvt.s32.f32 %v28
    %32 = vset.pattern.permute.xlu0 0
    %33 = vperm.xlu0 %32, %v29
    %v34 = vpop.permute.xlu0 %33
    %37 = vset.pattern.permute.xlu0 0
    %38 = vperm.xlu0 %37, %v30
    %v39 = vpop.permute.xlu0 %38
    %v41 = vlaneseq
    %v42 = vshrl.u32 %v41, 7
    %v43 = vsub.s32 0, %v42
    %v44 = vrot.slane %v16, %v43
    %v45 = vmul.f32 %v34, %v44
    %v46 = vmul.f32 %v39, %v44
    %v47 = vadd.f32 %v23, %v45
    %v48 = vadd.f32 %v23, %v46
    %vm49 = vcmp.eq.s32.totalorder %v17, 1
    %vm50 = vcmp.eq.s32.totalorder %v18, 1
    %v51 = vsel %vm49, 1, 0
    %v52 = vsel %vm50, 1, 0
    %v53 = vcvt.s32.f32 %v51
    %v54 = vcvt.s32.f32 %v52
    %56 = vset.pattern.permute.xlu0 0
    %57 = vperm.xlu0 %56, %v53
    %v58 = vpop.permute.xlu0 %57
    %61 = vset.pattern.permute.xlu0 0
    %62 = vperm.xlu0 %61, %v54
    %v63 = vpop.permute.xlu0 %62
    %v65 = vlaneseq
    %v66 = vshrl.u32 %v65, 7
    %v67 = vsub.s32 1, %v66
    %v68 = vrot.slane %v16, %v67
    %v69 = vmul.f32 %v58, %v68
    %v70 = vmul.f32 %v63, %v68
    %v71 = vadd.f32 %v47, %v69
    %v72 = vadd.f32 %v48, %v70
    %vm73 = vcmp.eq.s32.totalorder %v17, 2
    %vm74 = vcmp.eq.s32.totalorder %v18, 2
    %v75 = vsel %vm73, 1, 0
    %v76 = vsel %vm74, 1, 0
    %v77 = vcvt.s32.f32 %v75
    %v78 = vcvt.s32.f32 %v76
    %80 = vset.pattern.permute.xlu0 0
    %81 = vperm.xlu0 %80, %v77
    %v82 = vpop.permute.xlu0 %81
    %85 = vset.pattern.permute.xlu0 0
    %86 = vperm.xlu0 %85, %v78
    %v87 = vpop.permute.xlu0 %86
    %v89 = vlaneseq
    %v90 = vshrl.u32 %v89, 7
    %v91 = vsub.s32 2, %v90
    %v92 = vrot.slane %v16, %v91
    %v93 = vmul.f32 %v82, %v92
    %v94 = vmul.f32 %v87, %v92
    %v95 = vadd.f32 %v71, %v93
    %v96 = vadd.f32 %v72, %v94
    %vm97 = vcmp.eq.s32.totalorder %v17, 3
    %vm98 = vcmp.eq.s32.totalorder %v18, 3
    %v99 = vsel %vm97, 1, 0
    %v100 = vsel %vm98, 1, 0
    %v101 = vcvt.s32.f32 %v99
    %v102 = vcvt.s32.f32 %v100
    %104 = vset.pattern.permute.xlu0 0
    %105 = vperm.xlu0 %104, %v101
    %v106 = vpop.permute.xlu0 %105
    %109 = vset.pattern.permute.xlu0 0
    %110 = vperm.xlu0 %109, %v102
    %v111 = vpop.permute.xlu0 %110
    %v113 = vlaneseq
    %v114 = vshrl.u32 %v113, 7
    %v115 = vsub.s32 3, %v114
    %v116 = vrot.slane %v16, %v115
    %v117 = vmul.f32 %v106, %v116
    %v118 = vmul.f32 %v111, %v116
    %v119 = vadd.f32 %v95, %v117
    %v120 = vadd.f32 %v96, %v118
    %vm121 = vcmp.eq.s32.totalorder %v17, 4
    %vm122 = vcmp.eq.s32.totalorder %v18, 4
    %v123 = vsel %vm121, 1, 0
    %v124 = vsel %vm122, 1, 0
    %v125 = vcvt.s32.f32 %v123
    %v126 = vcvt.s32.f32 %v124
    %128 = vset.pattern.permute.xlu0 0
    %129 = vperm.xlu0 %128, %v125
    %v130 = vpop.permute.xlu0 %129
    %133 = vset.pattern.permute.xlu0 0
    %134 = vperm.xlu0 %133, %v126
    %v135 = vpop.permute.xlu0 %134
    %v137 = vlaneseq
    %v138 = vshrl.u32 %v137, 7
    %v139 = vsub.s32 4, %v138
    %v140 = vrot.slane %v16, %v139
    %v141 = vmul.f32 %v130, %v140
    %v142 = vmul.f32 %v135, %v140
    %v143 = vadd.f32 %v119, %v141
    %v144 = vadd.f32 %v120, %v142
    %vm145 = vcmp.eq.s32.totalorder %v17, 5
    %vm146 = vcmp.eq.s32.totalorder %v18, 5
    %v147 = vsel %vm145, 1, 0
    %v148 = vsel %vm146, 1, 0
    %v149 = vcvt.s32.f32 %v147
    %v150 = vcvt.s32.f32 %v148
    %152 = vset.pattern.permute.xlu0 0
    %153 = vperm.xlu0 %152, %v149
    %v154 = vpop.permute.xlu0 %153
    %157 = vset.pattern.permute.xlu0 0
    %158 = vperm.xlu0 %157, %v150
    %v159 = vpop.permute.xlu0 %158
    %v161 = vlaneseq
    %v162 = vshrl.u32 %v161, 7
    %v163 = vsub.s32 5, %v162
    %v164 = vrot.slane %v16, %v163
    %v165 = vmul.f32 %v154, %v164
    %v166 = vmul.f32 %v159, %v164
    %v167 = vadd.f32 %v143, %v165
    %v168 = vadd.f32 %v144, %v166
    %169 = vst [vmem:[#allocation2] sm:$0xff] %v167
    %170 = vst [vmem:[#allocation2 + $0x8] sm:$0xff] %v168
    // Predicated region
    $region14: #{tpu_custom_call.1} parent=1 // pred_check
      _
    $region15: #{tpu_custom_call.1} parent=1 // pred_check_branch
      %172 = sbr.rel (0) target = $region17
    $region16: #{tpu_custom_call.1} parent=1 // pred_region
      %s174 = ssub.s32 256, 256
      %175 = vsyncadd [#allocation3], %s174
      %s176 = sshll.u32 [#allocation2], 4
      %s177 = int_to_ptr.vmem [resolvable:$true] %s176
      %182 = dma.vmem_to_hbm [thread:$0]  %s177, 256, %s3, [#allocation3], 128, 128, 8
    $region17: #{tpu_custom_call.1} parent=1 // pred_fallthru
      _
    // Predicated region
    $region18: #{tpu_custom_call.1} parent=1 // pred_check
      _
    $region19: #{tpu_custom_call.1} parent=1 // pred_check_branch
      %184 = sbr.rel (0) target = $region21
    $region20: #{tpu_custom_call.1} parent=1 // pred_region
      %185 = dma.done [#allocation3], 256
    $region21: #{tpu_custom_call.1} parent=1 // pred_fallthru
      _
    %186 = vsyncpa [#allocation3], 1

</llo_original>
